<compile_context>
chip_gen: v6e
topology: v6e:2x2x1
jax: 0.10.0
libtpu: 0.0.40
codegen_flags: <defaults>
</compile_context>

<pallas_src>
import functools

import jax
import jax.numpy as jnp
from jax.experimental import pallas as pl
from jax.experimental.pallas import tpu as pltpu


def _auto_compute_dtype():
    """bf16 on v6e/v7x (native bf16 VPU + full-rate MXU), f32 otherwise."""
    try:
        kind = jax.devices()[0].device_kind.lower()
    except Exception:  # pragma: no cover - defensive
        return jnp.float32
    if ("v6" in kind) or ("v7" in kind) or ("7x" in kind):
        return jnp.bfloat16
    return jnp.float32


def _conv_bn_relu_kernel(x_ref, w_ref, shift_ref, o_ref, *,
                         ksize, pad, width, band, cin_p, nbands,
                         has_affine, has_relu):
    # x_ref:     (1, Cin_p, L)      one image, spatial flattened, H-pad + guard zeros
    # w_ref:     (Cout, K*K*Cin_p)  weight in im2col (kh, kw, ci) order, BN scale folded in
    # shift_ref: (Cout, 1)          folded BN shift / bias (f32)
    # o_ref:     (1, Cout, band)    one row band of the flattened NCHW output
    if nbands == 1:
        row0 = 0                                   # fully static window
    else:
        row0 = pl.program_id(1) * band
        if band % 128 == 0:
            row0 = pl.multiple_of(row0, 128)       # 128-aligned dynamic start hint

    # Horizontal "same"-padding masks: depend only on kw -> build once, (1, band).
    col = jax.lax.broadcasted_iota(jnp.int32, (1, band), 1) % width
    masks = []
    for kw in range(ksize):
        dk = kw - pad
        if dk == 0:
            masks.append(None)
        else:
            valid = jnp.logical_and(col + dk >= 0, col + dk < width)
            masks.append(valid.astype(x_ref.dtype))        # 0/1 mask in compute dtype

    taps = []
    for kh in range(ksize):                 # static python loops -> unrolled
        base = kh * width
        for kw in range(ksize):
            start = base + kw
            # Slice straight from the ref: offset folds into vld addressing, no
            # intermediate `win` value materialized in VMEM.
            patch = x_ref[0, :, pl.ds(row0 + start, band)]  # (Cin_p, band)
            m = masks[kw]
            if m is not None:
                patch = patch * m                            # sublane-broadcast mul
            taps.append(patch)

    # (K*K, Cin_p, band) -> (K*K*Cin_p, band): leading-dim collapse, lane dim kept.
    pmat = jnp.stack(taps, axis=0).reshape(ksize * ksize * cin_p, band)

    acc = jnp.dot(w_ref[...], pmat, preferred_element_type=jnp.float32)  # (Cout, band)
    if has_affine:
        acc = acc + shift_ref[...]          # (Cout, 1) broadcast, f32
    if has_relu:
        acc = jnp.maximum(acc, 0.0)
    o_ref[0] = acc.astype(o_ref.dtype)      # lane-dense store


def conv_bn_relu(x_nchw, weight, gamma=None, beta=None,
                 running_mean=None, running_var=None, *,
                 bias=None, stride=1, pad=1, bn_eps=1e-5,
                 has_bn=True, has_relu=True,
                 compute_dtype=None, out_dtype=jnp.float32):
    """x_nchw: (N, Cin, H, W); weight: (Cout, Cin, KH, KW) (PyTorch layout)."""
    if compute_dtype is None:
        compute_dtype = _auto_compute_dtype()
    compute_dtype = jnp.dtype(compute_dtype)
    out_dtype = jnp.dtype(out_dtype)
    itemsize = compute_dtype.itemsize

    n, cin, h, w = x_nchw.shape
    cout, cin_w, kh_, kw_ = weight.shape
    assert cin == cin_w and kh_ == kw_, "square kernel, groups=1 only"
    ksize = int(kh_)
    h_out = (h + 2 * pad - ksize) // stride + 1
    w_out = (w + 2 * pad - ksize) // stride + 1
    if stride != 1 or h_out != h or w_out != w:
        # TODO(synk): general stride / non-"same" padding / dilation / groups need a
        # strided-slice im2col path; only stride=1 'same' convs (2*pad == ksize-1)
        # are implemented in this optimized kernel.
        raise NotImplementedError("conv_bn_relu kernel supports stride=1 'same' convs")

    # ---- glue (no transposes): flatten spatial (free), pad channels to a sublane
    # multiple, add (pad rows + pad guard) zero lanes on both ends.
    sublane = 8 * (4 // itemsize)
    cin_p = ((cin + sublane - 1) // sublane) * sublane
    guard = pad * w + pad
    length = h * w + 2 * guard
    # TODO(synk): the pad+cast below is one extra HBM read/write pass over the
    # activations; for very large layers switch to memory_space=pl.ANY + manual
    # DMA into a pre-zeroed VMEM scratch (banded with halo) to remove it.
    x_flat = x_nchw.reshape(n, cin, h * w).astype(compute_dtype)
    x_flat = jnp.pad(x_flat, ((0, 0), (0, cin_p - cin), (guard, guard)))

    # ---- BN (eval mode) + bias folded into per-channel scale/shift (f32 fold).
    shift = jnp.zeros((cout,), jnp.float32)
    if bias is not None:
        shift = shift + bias.astype(jnp.float32)
    scale = None
    if has_bn:
        inv_std = jax.lax.rsqrt(running_var.astype(jnp.float32) + bn_eps)
        scale = gamma.astype(jnp.float32) * inv_std
        shift = scale * shift + (beta.astype(jnp.float32)
                                 - running_mean.astype(jnp.float32) * scale)
    has_affine = has_bn or (bias is not None)

    # ---- weight -> (Cout, K*K*Cin_p) in (kh, kw, ci) order, BN scale folded in (f32).
    wt = jnp.transpose(weight, (0, 2, 3, 1)).astype(jnp.float32)   # (Cout, K, K, Cin)
    if scale is not None:
        wt = wt * scale[:, None, None, None]
    wt = jnp.pad(wt, ((0, 0), (0, 0), (0, 0), (0, cin_p - cin)))
    kk_cin = ksize * ksize * cin_p
    w2 = wt.reshape(cout, kk_cin).astype(compute_dtype)
    shift2 = shift.reshape(cout, 1)                                 # f32 epilogue add

    # ---- band selection: LARGEST whole-row, 128-lane-aligned band within budget.
    MAX_BAND_LANES = 2048
    PMAT_BUDGET = 8 << 20
    aligned = [c for c in range(1, h_out + 1)
               if h_out % c == 0 and (c * w_out) % 128 == 0]
    if not aligned:
        tile_h = h_out          # masked-store fallback: correct, slower
    else:
        tile_h = aligned[0]
        for c in aligned:       # ascending -> keep the largest within budget
            band_c = c * w_out
            if band_c <= MAX_BAND_LANES and kk_cin * band_c * itemsize <= PMAT_BUDGET:
                tile_h = c
    band = tile_h * w_out
    nbands = h_out // tile_h

    # ---- VMEM limit sized to actual residency (double-buffered blocks + temps).
    resident = (2 * cin_p * length * itemsize          # image block x2
                + 2 * cout * kk_cin * itemsize         # weights x2
                + 2 * cout * 128 * 4                   # shift (lane-padded) x2
                + 2 * cout * band * out_dtype.itemsize # output band x2
                + kk_cin * band * itemsize             # pmat
                + cout * band * 4)                     # f32 accumulator
    vmem_limit = int(min(128 << 20, max(32 << 20, 2 * resident)))

    kernel = functools.partial(
        _conv_bn_relu_kernel,
        ksize=ksize, pad=pad, width=w, band=band, cin_p=cin_p, nbands=nbands,
        has_affine=has_affine, has_relu=has_relu)

    # TODO(synk): for large Cout*K*K*Cin add an innermost Cout grid axis with a
    # pmat VMEM scratch rebuilt only on cout_idx == 0; not needed at these sizes.
    out_flat = pl.pallas_call(
        kernel,
        out_shape=jax.ShapeDtypeStruct((n, cout, h_out * w_out), out_dtype),
        grid_spec=pltpu.PrefetchScalarGridSpec(
            num_scalar_prefetch=0,
            grid=(n, nbands),
            in_specs=[
                # Block index only changes with the batch axis -> DMA'd once per image.
                pl.BlockSpec((1, cin_p, length), lambda b, r: (b, 0, 0)),
                pl.BlockSpec((cout, kk_cin), lambda b, r: (0, 0)),
                pl.BlockSpec((cout, 1), lambda b, r: (0, 0)),
            ],
            out_specs=pl.BlockSpec((1, cout, band), lambda b, r: (b, 0, r)),
        ),
        compiler_params=pltpu.CompilerParams(
            dimension_semantics=("parallel", "arbitrary"),
            vmem_limit_bytes=vmem_limit),
    )(x_flat, w2, shift2)

    # (N, Cout, Ho*Wo) -> (N, Cout, Ho, Wo): free metadata reshape, already NCHW.
    return out_flat.reshape(n, cout, h_out, w_out)


def _reference(x_nchw, weight, gamma, beta, rmean, rvar,
               *, stride, pad, bn_eps, has_bn, has_relu):
    y = jax.lax.conv_general_dilated(
        x_nchw.astype(jnp.float32), weight.astype(jnp.float32),
        window_strides=(stride, stride), padding=[(pad, pad), (pad, pad)],
        dimension_numbers=("NCHW", "OIHW", "NCHW"),
        precision=jax.lax.Precision.HIGHEST)
    if has_bn:
        inv = jax.lax.rsqrt(rvar + bn_eps)
        y = (y - rmean[None, :, None, None]) * (gamma * inv)[None, :, None, None] \
            + beta[None, :, None, None]
    if has_relu:
        y = jnp.maximum(y, 0.0)
    return y


if __name__ == "__main__":
    # ConvBnRelu(in_planes=4, out_planes=8, ksize=3, stride=1, pad=1)
    N, CIN, COUT, H, W, K = 2, 4, 8, 16, 16, 3
    key = jax.random.PRNGKey(0)
    k1, k2, k3, k4, k5, k6 = jax.random.split(key, 6)

    x = jax.random.normal(k1, (N, CIN, H, W), jnp.float32)
    weight = jax.random.normal(k2, (COUT, CIN, K, K), jnp.float32) * 0.1
    gamma = 1.0 + 0.1 * jax.random.normal(k3, (COUT,), jnp.float32)
    beta = 0.1 * jax.random.normal(k4, (COUT,), jnp.float32)
    running_mean = 0.1 * jax.random.normal(k5, (COUT,), jnp.float32)
    running_var = jnp.abs(jax.random.normal(k6, (COUT,), jnp.float32)) + 0.5

    ref = _reference(x, weight, gamma, beta, running_mean, running_var,
                     stride=1, pad=1, bn_eps=1e-5, has_bn=True, has_relu=True)

    # 1) f32 compute path: bit-for-bit-ish vs the PyTorch-style f32 reference.
    out_f32 = conv_bn_relu(x, weight, gamma, beta, running_mean, running_var,
                           stride=1, pad=1, bn_eps=1e-5, has_bn=True, has_relu=True,
                           compute_dtype=jnp.float32)
    out_f32 = jax.block_until_ready(out_f32)
    assert out_f32.shape == (N, COUT, H, W)
    assert jnp.allclose(out_f32, ref, atol=2e-4, rtol=2e-4), \
        float(jnp.max(jnp.abs(out_f32 - ref)))

    # 2) bf16 compute path (the v6e/v7x perf default): f32 accumulation, looser tol.
    out_bf16 = conv_bn_relu(x, weight, gamma, beta, running_mean, running_var,
                            stride=1, pad=1, bn_eps=1e-5, has_bn=True, has_relu=True,
                            compute_dtype=jnp.bfloat16)
    out_bf16 = jax.block_until_ready(out_bf16)
    assert out_bf16.shape == (N, COUT, H, W)
    assert jnp.allclose(out_bf16, ref, atol=2e-2, rtol=2e-2), \
        float(jnp.max(jnp.abs(out_bf16 - ref)))

    print("KERNEL_OK")
</pallas_src>

<mosaic_0001>
module attributes {stable_mosaic.version = 11 : i64} {
  func.func @_conv_bn_relu_kernel(%arg0: i32, %arg1: i32, %arg2: memref<1x8x290xf32, #tpu.memory_space<vmem>>, %arg3: memref<8x72xf32, #tpu.memory_space<vmem>>, %arg4: memref<8x1xf32, #tpu.memory_space<vmem>>, %arg5: memref<1x8x256xf32, #tpu.memory_space<vmem>>) attributes {dimension_semantics = [#tpu.dimension_semantics<parallel>, #tpu.dimension_semantics<arbitrary>], iteration_bounds = array<i64: 2, 1>, scalar_prefetch = 0 : i64, scratch_operands = 0 : i64, tpu.core_type = #tpu.core_type<tc>, window_params = [{transform_indices = @transform_0, window_bounds = array<i64: 1, 8, 290>}, {pipeline_mode = #tpu.pipeline_mode<synchronous>, transform_indices = @transform_1, window_bounds = array<i64: 8, 72>}, {pipeline_mode = #tpu.pipeline_mode<synchronous>, transform_indices = @transform_2, window_bounds = array<i64: 8, 1>}, {transform_indices = @transform_3, window_bounds = array<i64: 1, 8, 256>}]} {
    %0 = tpu.iota {dimensions = array<i32: 1>} : vector<1x256xi32>
    %c16_i32 = arith.constant 16 : i32
    %c0_i32 = arith.constant 0 : i32
    %1 = arith.cmpi eq, %c16_i32, %c0_i32 : i32
    %c1_i32 = arith.constant 1 : i32
    %2 = arith.select %1, %c1_i32, %c16_i32 : i32
    %3 = vector.broadcast %2 : i32 to vector<1x256xi32>
    %4 = arith.remsi %0, %3 : vector<1x256xi32>
    %c0_i32_0 = arith.constant 0 : i32
    %5 = vector.broadcast %c0_i32_0 : i32 to vector<1x256xi32>
    %6 = arith.cmpi ne, %4, %5 : vector<1x256xi32>
    %c0_i32_1 = arith.constant 0 : i32
    %7 = vector.broadcast %c0_i32_1 : i32 to vector<1x256xi32>
    %8 = arith.cmpi slt, %4, %7 : vector<1x256xi32>
    %c0_i32_2 = arith.constant 0 : i32
    %9 = arith.cmpi slt, %2, %c0_i32_2 : i32
    %10 = vector.broadcast %9 : i1 to vector<1x256xi1>
    %11 = vector.broadcast %10 : vector<1x256xi1> to vector<1x256xi1>
    %12 = arith.xori %8, %11 : vector<1x256xi1>
    %13 = arith.andi %12, %6 : vector<1x256xi1>
    %14 = vector.broadcast %2 : i32 to vector<1x256xi32>
    %15 = arith.addi %4, %14 : vector<1x256xi32>
    %16 = arith.select %13, %15, %4 : vector<1x256xi1>, vector<1x256xi32>
    %c-1_i32 = arith.constant -1 : i32
    %17 = vector.broadcast %c-1_i32 : i32 to vector<1x256xi32>
    %18 = arith.addi %16, %17 : vector<1x256xi32>
    %c0_i32_3 = arith.constant 0 : i32
    %19 = vector.broadcast %c0_i32_3 : i32 to vector<1x256xi32>
    %20 = arith.cmpi sge, %18, %19 : vector<1x256xi32>
    %c-1_i32_4 = arith.constant -1 : i32
    %21 = vector.broadcast %c-1_i32_4 : i32 to vector<1x256xi32>
    %22 = arith.addi %16, %21 : vector<1x256xi32>
    %c16_i32_5 = arith.constant 16 : i32
    %23 = vector.broadcast %c16_i32_5 : i32 to vector<1x256xi32>
    %24 = arith.cmpi slt, %22, %23 : vector<1x256xi32>
    %25 = arith.andi %20, %24 : vector<1x256xi1>
    %26 = arith.extui %25 : vector<1x256xi1> to vector<1x256xi32>
    %27 = arith.sitofp %26 : vector<1x256xi32> to vector<1x256xf32>
    %c1_i32_6 = arith.constant 1 : i32
    %28 = vector.broadcast %c1_i32_6 : i32 to vector<1x256xi32>
    %29 = arith.addi %16, %28 : vector<1x256xi32>
    %c0_i32_7 = arith.constant 0 : i32
    %30 = vector.broadcast %c0_i32_7 : i32 to vector<1x256xi32>
    %31 = arith.cmpi sge, %29, %30 : vector<1x256xi32>
    %c1_i32_8 = arith.constant 1 : i32
    %32 = vector.broadcast %c1_i32_8 : i32 to vector<1x256xi32>
    %33 = arith.addi %16, %32 : vector<1x256xi32>
    %c16_i32_9 = arith.constant 16 : i32
    %34 = vector.broadcast %c16_i32_9 : i32 to vector<1x256xi32>
    %35 = arith.cmpi slt, %33, %34 : vector<1x256xi32>
    %36 = arith.andi %31, %35 : vector<1x256xi1>
    %37 = arith.extui %36 : vector<1x256xi1> to vector<1x256xi32>
    %38 = arith.sitofp %37 : vector<1x256xi32> to vector<1x256xf32>
    %c0 = arith.constant 0 : index
    %c0_10 = arith.constant 0 : index
    %c0_11 = arith.constant 0 : index
    %39 = vector.load %arg2[%c0, %c0_10, %c0_11] : memref<1x8x290xf32, #tpu.memory_space<vmem>>, vector<1x8x256xf32>
    %40 = vector.shape_cast %39 : vector<1x8x256xf32> to vector<8x256xf32>
    %41 = vector.broadcast %27 : vector<1x256xf32> to vector<8x256xf32>
    %42 = arith.mulf %40, %41 : vector<8x256xf32>
    %c0_12 = arith.constant 0 : index
    %c0_13 = arith.constant 0 : index
    %c1 = arith.constant 1 : index
    %43 = vector.load %arg2[%c0_12, %c0_13, %c1] : memref<1x8x290xf32, #tpu.memory_space<vmem>>, vector<1x8x256xf32>
    %44 = vector.shape_cast %43 : vector<1x8x256xf32> to vector<8x256xf32>
    %c0_14 = arith.constant 0 : index
    %c0_15 = arith.constant 0 : index
    %c2 = arith.constant 2 : index
    %45 = vector.load %arg2[%c0_14, %c0_15, %c2] : memref<1x8x290xf32, #tpu.memory_space<vmem>>, vector<1x8x256xf32>
    %46 = vector.shape_cast %45 : vector<1x8x256xf32> to vector<8x256xf32>
    %47 = vector.broadcast %38 : vector<1x256xf32> to vector<8x256xf32>
    %48 = arith.mulf %46, %47 : vector<8x256xf32>
    %c0_16 = arith.constant 0 : index
    %c0_17 = arith.constant 0 : index
    %c16 = arith.constant 16 : index
    %49 = vector.load %arg2[%c0_16, %c0_17, %c16] : memref<1x8x290xf32, #tpu.memory_space<vmem>>, vector<1x8x256xf32>
    %50 = vector.shape_cast %49 : vector<1x8x256xf32> to vector<8x256xf32>
    %51 = vector.broadcast %27 : vector<1x256xf32> to vector<8x256xf32>
    %52 = arith.mulf %50, %51 : vector<8x256xf32>
    %c0_18 = arith.constant 0 : index
    %c0_19 = arith.constant 0 : index
    %c17 = arith.constant 17 : index
    %53 = vector.load %arg2[%c0_18, %c0_19, %c17] : memref<1x8x290xf32, #tpu.memory_space<vmem>>, vector<1x8x256xf32>
    %54 = vector.shape_cast %53 : vector<1x8x256xf32> to vector<8x256xf32>
    %c0_20 = arith.constant 0 : index
    %c0_21 = arith.constant 0 : index
    %c18 = arith.constant 18 : index
    %55 = vector.load %arg2[%c0_20, %c0_21, %c18] : memref<1x8x290xf32, #tpu.memory_space<vmem>>, vector<1x8x256xf32>
    %56 = vector.shape_cast %55 : vector<1x8x256xf32> to vector<8x256xf32>
    %57 = vector.broadcast %38 : vector<1x256xf32> to vector<8x256xf32>
    %58 = arith.mulf %56, %57 : vector<8x256xf32>
    %c0_22 = arith.constant 0 : index
    %c0_23 = arith.constant 0 : index
    %c32 = arith.constant 32 : index
    %59 = vector.load %arg2[%c0_22, %c0_23, %c32] : memref<1x8x290xf32, #tpu.memory_space<vmem>>, vector<1x8x256xf32>
    %60 = vector.shape_cast %59 : vector<1x8x256xf32> to vector<8x256xf32>
    %61 = vector.broadcast %27 : vector<1x256xf32> to vector<8x256xf32>
    %62 = arith.mulf %60, %61 : vector<8x256xf32>
    %c0_24 = arith.constant 0 : index
    %c0_25 = arith.constant 0 : index
    %c33 = arith.constant 33 : index
    %63 = vector.load %arg2[%c0_24, %c0_25, %c33] : memref<1x8x290xf32, #tpu.memory_space<vmem>>, vector<1x8x256xf32>
    %64 = vector.shape_cast %63 : vector<1x8x256xf32> to vector<8x256xf32>
    %c0_26 = arith.constant 0 : index
    %c0_27 = arith.constant 0 : index
    %c34 = arith.constant 34 : index
    %65 = vector.load %arg2[%c0_26, %c0_27, %c34] : memref<1x8x290xf32, #tpu.memory_space<vmem>>, vector<1x8x256xf32>
    %66 = vector.shape_cast %65 : vector<1x8x256xf32> to vector<8x256xf32>
    %67 = vector.broadcast %38 : vector<1x256xf32> to vector<8x256xf32>
    %68 = arith.mulf %66, %67 : vector<8x256xf32>
    %69 = vector.shape_cast %42 : vector<8x256xf32> to vector<1x8x256xf32>
    %70 = vector.shape_cast %44 : vector<8x256xf32> to vector<1x8x256xf32>
    %71 = vector.shape_cast %48 : vector<8x256xf32> to vector<1x8x256xf32>
    %72 = vector.shape_cast %52 : vector<8x256xf32> to vector<1x8x256xf32>
    %73 = vector.shape_cast %54 : vector<8x256xf32> to vector<1x8x256xf32>
    %74 = vector.shape_cast %58 : vector<8x256xf32> to vector<1x8x256xf32>
    %75 = vector.shape_cast %62 : vector<8x256xf32> to vector<1x8x256xf32>
    %76 = vector.shape_cast %64 : vector<8x256xf32> to vector<1x8x256xf32>
    %77 = vector.shape_cast %68 : vector<8x256xf32> to vector<1x8x256xf32>
    %78 = tpu.concatenate %69, %70, %71, %72, %73, %74, %75, %76, %77 in 0 : vector<1x8x256xf32>, vector<1x8x256xf32>, vector<1x8x256xf32>, vector<1x8x256xf32>, vector<1x8x256xf32>, vector<1x8x256xf32>, vector<1x8x256xf32>, vector<1x8x256xf32>, vector<1x8x256xf32> -> vector<9x8x256xf32>
    %79 = vector.shape_cast %78 : vector<9x8x256xf32> to vector<72x256xf32>
    %c0_28 = arith.constant 0 : index
    %c0_29 = arith.constant 0 : index
    %80 = vector.load %arg3[%c0_28, %c0_29] : memref<8x72xf32, #tpu.memory_space<vmem>>, vector<8x72xf32>
    %cst = arith.constant dense<0.000000e+00> : vector<8x256xf32>
    %81 = tpu.matmul %80, %79, %cst {dimension_numbers = #tpu.dot_dimension_numbers<[1], [0], [0], [1], [0, 0, 1, 1], [], []>} : vector<8x72xf32>, vector<72x256xf32>, vector<8x256xf32> -> vector<8x256xf32>
    %c0_30 = arith.constant 0 : index
    %c0_31 = arith.constant 0 : index
    %82 = vector.load %arg4[%c0_30, %c0_31] : memref<8x1xf32, #tpu.memory_space<vmem>>, vector<8x1xf32>
    %83 = vector.broadcast %82 : vector<8x1xf32> to vector<8x256xf32>
    %84 = arith.addf %81, %83 : vector<8x256xf32>
    %cst_32 = arith.constant 0.000000e+00 : f32
    %85 = vector.broadcast %cst_32 : f32 to vector<8x256xf32>
    %86 = arith.maximumf %84, %85 : vector<8x256xf32>
    %c0_33 = arith.constant 0 : index
    %c0_34 = arith.constant 0 : index
    %c0_35 = arith.constant 0 : index
    %87 = vector.load %arg5[%c0_33, %c0_34, %c0_35] : memref<1x8x256xf32, #tpu.memory_space<vmem>>, vector<1x8x256xf32>
    %88 = vector.shape_cast %87 : vector<1x8x256xf32> to vector<8x256xf32>
    %89 = vector.shape_cast %86 : vector<8x256xf32> to vector<1x8x256xf32>
    tpu.vector_store %arg5[%c0_33, %c0_34, %c0_35], %89 {strides = array<i32>} : memref<1x8x256xf32, #tpu.memory_space<vmem>>, vector<1x8x256xf32>,
    return
  }
  func.func @transform_0(%arg0: i32, %arg1: i32) -> (i32, i32, i32) {
    %c0_i32 = arith.constant 0 : i32
    %c0_i32_0 = arith.constant 0 : i32
    %c0_i32_1 = arith.constant 0 : i32
    return %arg0, %c0_i32, %c0_i32_0 : i32, i32, i32
  }
  func.func @transform_1(%arg0: i32, %arg1: i32) -> (i32, i32) {
    %c0_i32 = arith.constant 0 : i32
    %c0_i32_0 = arith.constant 0 : i32
    %c0_i32_1 = arith.constant 0 : i32
    return %c0_i32, %c0_i32_0 : i32, i32
  }
  func.func @transform_2(%arg0: i32, %arg1: i32) -> (i32, i32) {
    %c0_i32 = arith.constant 0 : i32
    %c0_i32_0 = arith.constant 0 : i32
    %c0_i32_1 = arith.constant 0 : i32
    return %c0_i32, %c0_i32_0 : i32, i32
  }
  func.func @transform_3(%arg0: i32, %arg1: i32) -> (i32, i32, i32) {
    %c0_i32 = arith.constant 0 : i32
    %c0_i32_0 = arith.constant 0 : i32
    return %arg0, %c0_i32, %arg1 : i32, i32, i32
  }
}

</mosaic_0001>

<llo_original>
// kernel: tpu_custom_call.1
$region0: #{tpu_custom_call.1}
  #allocation0 [shape = 'u32[]', space=smem, size = 0x4, offset = 0x4, fixed_abs, tag = 'smem constant byte address 0x4 - core index']
  #allocation1 [shape = 'u32[144,128]{1,0:T(1,128)}', space=vmem, size = 0x12000, scoped, tag = 'internal scratch']
  %s0 = inlined_call_operand.hbm [shape: f32[2,8,290], index: 0, kind: input, shape index: {}]
  %s1 = inlined_call_operand.vmem [shape: f32[8,72], index: 1, kind: input, shape index: {}]
  %s2 = inlined_call_operand.vmem [shape: f32[8,1], index: 2, kind: input, shape index: {}]
  %s3 = inlined_call_operand.hbm [shape: f32[2,8,256], index: 3, kind: output, shape index: {}]
  %s4 = sld [smem:[#allocation0]]
  $region49: #{tpu_custom_call.1} parent=0
    _
  %s6 = ssub.s32 1, %s4
  %s7 = scalar_select 0, %s6, %s4
  $region1: #{tpu_custom_call.1} parent=0
    #allocation2 [shape = 'u8[24576]{0}', space=vmem, size = 0x6000, scoped, tag = 'input window, operand 0']
    #allocation3 [shape = 's32[2]{0}', space=sflag, size = 0x8, scoped, tag = 'scoped memory for tpu_custom_call.1']
    #allocation4 [shape = 's32[2]{0}', space=sflag, size = 0x8, scoped, tag = 'scoped memory for tpu_custom_call.1']
    #allocation5 [shape = 'u8[16384]{0}', space=vmem, size = 0x4000, scoped, tag = 'output window, operand 0']
    %8 = vsyncpa [#allocation3], 0
    %s9 = scalar_lea.sflag [#allocation3], 1
    %10 = vsyncpa %s9, 0
    %11 = vsyncpa [#allocation4], 0
    %s12 = scalar_lea.sflag [#allocation4], 1
    %13 = vsyncpa %s12, 0
    loop: start=0, step=1, limit=4
    $region2: #{tpu_custom_call.1} parent=1 // loop_pre_header
      _
    $region3: #{tpu_custom_call.1} parent=1 // loop_header
      %s15 = sphi 0, %s19
      %p16 = scmp.ge.s32.totalorder %s15, 4
      %s22 = sphi 0, %s34
      %s23 = sphi 0, %s30
      %s24 = sphi 0, %s22
      %s25 = sphi 0, %s23
      %s26 = sphi 0, %s24
      %s27 = sphi 0, %s25
      %s37 = sphi 0, %s39
      %s40 = sphi 0, %s37
      %s41 = sphi 0, %s40
      %s57 = sphi 0, %s41
      %s61 = sphi 0, %s61
      %s63 = sphi 0, %s61
      %s64 = sphi 0, %s63
      %s78 = sphi 0, %s64
      %s82 = sphi 0, %s82
      %s84 = sphi 0, %s82
      %s85 = sphi 0, %s84
      %s99 = sphi 0, %s85
      %s107 = sphi 0, %s109
      %s110 = sphi 0, %s107
      %s111 = sphi 0, %s110
      %s127 = sphi 0, %s111
    $region4: #{tpu_custom_call.1} parent=1 // loop_header_branch
      %18 = sbr.rel (%p16) target = $region8
    $region5: #{tpu_custom_call.1} parent=1 // loop_body
      %s20 = ssub.s32 %s15, 1
      %s21 = ssub.s32 %s15, 2
      %s28 = sadd.s32 1, %s23
      %p29 = scmp.ge.s32.totalorder %s28, 1
      %s30 = scalar_select %p29, 0, %s28
      %s31 = sadd.s32 1, %s22
      %s32 = scalar_select %p29, %s31, %s22
      %p33 = scmp.ge.s32.totalorder %s32, 2
      %s34 = scalar_select %p33, 0, %s32
      %s35 = ssub.s32 %s22, %s34
      %p36 = scmp.eq.s32.totalorder %s35, 0
      %s38 = sadd.s32 %s37, 1
      %s39 = scalar_select %p36, %s37, %s38
      %p42 = pneg %p36
      %p43 = scmp.eq.s32.totalorder %s15, 1
      %p44 = por %p42, %p43
      %p45 = scmp.ne.s32.totalorder %s37, %s40
      %p46 = scmp.eq.s32.totalorder %s15, 0
      %p47 = por %p45, %p46
      %p48 = scmp.ne.s32.totalorder %s37, %s40
      %p49 = scmp.eq.s32.totalorder %s20, 1
      %p50 = por %p48, %p49
      %p51 = scmp.ne.s32.totalorder %s40, %s41
      %p52 = scmp.eq.s32.totalorder %s20, 0
      %p53 = por %p51, %p52
      %p54 = scmp.ne.s32.totalorder %s40, %s41
      %p55 = scmp.eq.s32.totalorder %s21, 1
      %p56 = por %p54, %p55
      %p58 = scmp.ne.s32.totalorder %s41, %s57
      %p59 = scmp.eq.s32.totalorder %s21, 0
      %p60 = por %p58, %p59
      %s62 = sadd.s32 %s61, 1
      %p65 = scmp.eq.s32.totalorder %s15, 1
      %p66 = scmp.ne.s32.totalorder %s61, %s63
      %p67 = scmp.eq.s32.totalorder %s15, 0
      %p68 = por %p66, %p67
      %p69 = scmp.ne.s32.totalorder %s61, %s63
      %p70 = scmp.eq.s32.totalorder %s20, 1
      %p71 = por %p69, %p70
      %p72 = scmp.ne.s32.totalorder %s63, %s64
      %p73 = scmp.eq.s32.totalorder %s20, 0
      %p74 = por %p72, %p73
      %p75 = scmp.ne.s32.totalorder %s63, %s64
      %p76 = scmp.eq.s32.totalorder %s21, 1
      %p77 = por %p75, %p76
      %p79 = scmp.ne.s32.totalorder %s64, %s78
      %p80 = scmp.eq.s32.totalorder %s21, 0
      %p81 = por %p79, %p80
      %s83 = sadd.s32 %s82, 1
      %p86 = scmp.eq.s32.totalorder %s15, 1
      %p87 = scmp.ne.s32.totalorder %s82, %s84
      %p88 = scmp.eq.s32.totalorder %s15, 0
      %p89 = por %p87, %p88
      %p90 = scmp.ne.s32.totalorder %s82, %s84
      %p91 = scmp.eq.s32.totalorder %s20, 1
      %p92 = por %p90, %p91
      %p93 = scmp.ne.s32.totalorder %s84, %s85
      %p94 = scmp.eq.s32.totalorder %s20, 0
      %p95 = por %p93, %p94
      %p96 = scmp.ne.s32.totalorder %s84, %s85
      %p97 = scmp.eq.s32.totalorder %s21, 1
      %p98 = por %p96, %p97
      %p100 = scmp.ne.s32.totalorder %s85, %s99
      %p101 = scmp.eq.s32.totalorder %s21, 0
      %p102 = por %p100, %p101
      %s103 = ssub.s32 %s22, %s34
      %s104 = ssub.s32 %s23, %s30
      %s105 = sor.u32 %s103, %s104
      %p106 = scmp.eq.s32.totalorder %s105, 0
      %s108 = sadd.s32 %s107, 1
      %s109 = scalar_select %p106, %s107, %s108
      %p112 = pneg %p106
      %p113 = scmp.eq.s32.totalorder %s15, 1
      %p114 = por %p112, %p113
      %p115 = scmp.ne.s32.totalorder %s107, %s110
      %p116 = scmp.eq.s32.totalorder %s15, 0
      %p117 = por %p115, %p116
      %p118 = scmp.ne.s32.totalorder %s107, %s110
      %p119 = scmp.eq.s32.totalorder %s20, 1
      %p120 = por %p118, %p119
      %p121 = scmp.ne.s32.totalorder %s110, %s111
      %p122 = scmp.eq.s32.totalorder %s20, 0
      %p123 = por %p121, %p122
      %p124 = scmp.ne.s32.totalorder %s110, %s111
      %p125 = scmp.eq.s32.totalorder %s21, 1
      %p126 = por %p124, %p125
      %p128 = scmp.ne.s32.totalorder %s111, %s127
      %p129 = scmp.eq.s32.totalorder %s21, 0
      %p130 = por %p128, %p129
      %p131 = scmp.le.s32.totalorder 1, %s15
      %p132 = scmp.lt.s32.totalorder %s15, 3
      %p133 = pnand %p131, %p132
      %p134 = pneg %p133
      // Predicated region
      $region9: #{tpu_custom_call.1} parent=5 // pred_check
        _
      $region10: #{tpu_custom_call.1} parent=5 // pred_check_branch
        %136 = sbr.rel (%p133) target = $region12
      $region11: #{tpu_custom_call.1} parent=5 // pred_region
        %s137 = ssub.s32 %s15, 1
        // Predicated region
        $region13: #{tpu_custom_call.1} parent=11 // pred_check
          %p138 = pneg %p74
        $region14: #{tpu_custom_call.1} parent=11 // pred_check_branch
          %140 = sbr.rel (%p138) target = $region16
        $region15: #{tpu_custom_call.1} parent=11 // pred_region
          _
        $region16: #{tpu_custom_call.1} parent=11 // pred_fallthru
          _
        // Predicated region
        $region17: #{tpu_custom_call.1} parent=11 // pred_check
          %p141 = pneg %p95
        $region18: #{tpu_custom_call.1} parent=11 // pred_check_branch
          %143 = sbr.rel (%p141) target = $region20
        $region19: #{tpu_custom_call.1} parent=11 // pred_region
          _
        $region20: #{tpu_custom_call.1} parent=11 // pred_fallthru
          _
      $region12: #{tpu_custom_call.1} parent=5 // pred_fallthru
        _
      %p144 = scmp.lt.s32.totalorder %s15, 2
      // Predicated region
      $region21: #{tpu_custom_call.1} parent=5 // pred_check
        %p145 = pneg %p144
      $region22: #{tpu_custom_call.1} parent=5 // pred_check_branch
        %147 = sbr.rel (%p145) target = $region24
      $region23: #{tpu_custom_call.1} parent=5 // pred_region
        // Predicated region
        $region25: #{tpu_custom_call.1} parent=23 // pred_check
          %p148 = pneg %p47
        $region26: #{tpu_custom_call.1} parent=23 // pred_check_branch
          %150 = sbr.rel (%p148) target = $region28
        $region27: #{tpu_custom_call.1} parent=23 // pred_region
          %s151 = sand.u32 %s37, 1
          %s152 = scalar_lea.sflag [#allocation3], %s151
          %s153 = sand.u32 %s37, 1
          %s154 = smul.addr %s153, 24
          %s155 = scalar_lea.vmem [#allocation2], %s154
          %s157 = ssub.s32 384, 384
          %158 = vsyncadd %s152, %s157
          %s159 = smul.addr %s22, 3
          %s160 = smul.addr %s159, 128
          %s161 = scalar_lea.hbm %s0, %s160
          %s163 = sshll.u32 %s155, 4
          %s164 = int_to_ptr.vmem [resolvable:$true] %s163
          %166 = dma.hbm_to_vmem [thread:$0]  %s161, 384, %s164, %s152
        $region28: #{tpu_custom_call.1} parent=23 // pred_fallthru
          _
      $region24: #{tpu_custom_call.1} parent=5 // pred_fallthru
        _
      %p167 = scmp.le.s32.totalorder 1, %s15
      %p168 = scmp.lt.s32.totalorder %s15, 3
      %p169 = pnand %p167, %p168
      %p170 = pneg %p169
      // Predicated region
      $region29: #{tpu_custom_call.1} parent=5 // pred_check
        _
      $region30: #{tpu_custom_call.1} parent=5 // pred_check_branch
        %172 = sbr.rel (%p169) target = $region32
      $region31: #{tpu_custom_call.1} parent=5 // pred_region
        %s173 = ssub.s32 %s15, 1
        %s174 = sand.u32 %s40, 1
        %s175 = scalar_lea.sflag [#allocation3], %s174
        %s176 = sand.u32 %s40, 1
        %s177 = smul.addr %s176, 24
        %s178 = scalar_lea.vmem [#allocation2], %s177
        // Predicated region
        $region33: #{tpu_custom_call.1} parent=31 // pred_check
          %p179 = pneg %p53
        $region34: #{tpu_custom_call.1} parent=31 // pred_check_branch
          %181 = sbr.rel (%p179) target = $region36
        $region35: #{tpu_custom_call.1} parent=31 // pred_region
          %182 = dma.done %s175, 384
        $region36: #{tpu_custom_call.1} parent=31 // pred_fallthru
          _
        %s183 = sand.u32 %s40, 1
        %s184 = scalar_lea.sflag [#allocation3], %s183
        %s185 = sand.u32 %s40, 1
        %s186 = smul.addr %s185, 24
        %s187 = scalar_lea.vmem [#allocation2], %s186
        %p188 = pneg %p53
        %p189 = pneg %p50
        %p190 = pneg %p74
        %p191 = pneg %p71
        %p192 = pneg %p95
        %p193 = pneg %p92
        %p194 = pneg %p123
        %p195 = pneg %p120
        %s196 = sand.u32 %s110, 1
        %s197 = scalar_lea.sflag [#allocation4], %s196
        %s198 = sand.u32 %s110, 1
        %s199 = smul.addr %s198, 16
        %s200 = scalar_lea.vmem [#allocation5], %s199
        %s201 = smul.u32 2, %s25
        %v202 = vlaneseq
        %v203 = vand.u32 %v202, 127
        %v204 = vadd.s32 %v203, 128
        %vm205 = vcmp.lt.s32.totalorder %v203, 0
        %v206 = vsub.s32 0, %v203
        %v207 = vsel %vm205, %v206, %v203
        %v208 = vshrl.u32 %v207, 4
        %v209 = vand.u32 %v207, 15
        %v210 = vsub.s32 0, %v209
        %v211 = vsel %vm205, %v210, %v209
        %vm212 = vcmp.lt.s32.totalorder %v204, 0
        %v213 = vsub.s32 0, %v204
        %v214 = vsel %vm212, %v213, %v204
        %v215 = vshrl.u32 %v214, 4
        %v216 = vand.u32 %v214, 15
        %v217 = vsub.s32 0, %v216
        %v218 = vsel %vm212, %v217, %v216
        %vm219 = vcmp.ne.s32.totalorder %v211, 0
        %vm220 = vcmp.ne.s32.totalorder %v218, 0
        %vm221 = vcmp.lt.s32.totalorder %v211, 0
        %vm222 = vcmp.lt.s32.totalorder %v218, 0
        %vm223 = vmand %vm221, %vm219
        %vm224 = vmand %vm222, %vm220
        %v225 = vadd.s32 %v211, 16
        %v226 = vadd.s32 %v218, 16
        %v227 = vsel %vm223, %v225, %v211
        %v228 = vsel %vm224, %v226, %v218
        %v229 = vadd.s32 %v227, 4294967295
        %v230 = vadd.s32 %v228, 4294967295
        %vm231 = vcmp.ge.s32.totalorder %v229, 0
        %vm232 = vcmp.ge.s32.totalorder %v230, 0
        %vm233 = vcmp.lt.s32.totalorder %v229, 16
        %vm234 = vcmp.lt.s32.totalorder %v230, 16
        %vm235 = vmand %vm231, %vm233
        %vm236 = vmand %vm232, %vm234
        %v237 = vsel %vm235, 1, 0
        %v238 = vsel %vm236, 1, 0
        %v239 = vcvt.s32.f32 %v237
        %v240 = vcvt.s32.f32 %v238
        %v241 = vadd.s32 %v227, 1
        %v242 = vadd.s32 %v228, 1
        %vm243 = vcmp.ge.s32.totalorder %v241, 0
        %vm244 = vcmp.ge.s32.totalorder %v242, 0
        %vm245 = vcmp.lt.s32.totalorder %v241, 16
        %vm246 = vcmp.lt.s32.totalorder %v242, 16
        %vm247 = vmand %vm243, %vm245
        %vm248 = vmand %vm244, %vm246
        %v249 = vsel %vm247, 1, 0
        %v250 = vsel %vm248, 1, 0
        %v251 = vcvt.s32.f32 %v249
        %v252 = vcvt.s32.f32 %v250
        %v253 = vld [vmem:[%s178] sm:$0xff]
        %v254 = vld [vmem:[%s178 + $0x8] sm:$0xff]
        %v255 = vmul.f32 %v253, %v239
        %v256 = vmul.f32 %v254, %v240
        %v257 = vld [vmem:[%s178 + $0x10] sm:$0xff]
        %260 = vrot.lane.b32.xlu0 %v251, 2
        %v261 = vpop.permute.xlu0 %260
        %262 = vrot.lane.b32.xlu0 %v252, 2
        %v263 = vpop.permute.xlu0 %262
        %vm264 = vcmask 15360
        %v265 = vsel %vm264, %v261, %v263
        %v269 = vmul.f32 %v253, %v261
        %v270 = vmul.f32 %v254, %v265
        %v271 = vmul.f32 %v257, %v263
        %274 = vrot.lane.b32.xlu0 %v239, 16
        %v275 = vpop.permute.xlu0 %274
        %276 = vrot.lane.b32.xlu0 %v240, 16
        %v277 = vpop.permute.xlu0 %276
        %vm278 = vcmask 130048
        %v279 = vsel %vm278, %v275, %v277
        %v283 = vmul.f32 %v253, %v275
        %v284 = vmul.f32 %v254, %v279
        %v285 = vmul.f32 %v257, %v277
        %286 = vrot.lane.b32.xlu0 %v251, 18
        %v287 = vpop.permute.xlu0 %286
        %288 = vrot.lane.b32.xlu0 %v252, 18
        %v289 = vpop.permute.xlu0 %288
        %vm290 = vcmask 146432
        %v291 = vsel %vm290, %v287, %v289
        %v295 = vmul.f32 %v253, %v287
        %v296 = vmul.f32 %v254, %v291
        %v297 = vmul.f32 %v257, %v289
        %298 = vrot.lane.b32.xlu0 %v239, 32
        %v299 = vpop.permute.xlu0 %298
        %300 = vrot.lane.b32.xlu0 %v240, 32
        %v301 = vpop.permute.xlu0 %300
        %vm302 = vcmask 261120
        %v303 = vsel %vm302, %v299, %v301
        %v307 = vmul.f32 %v253, %v299
        %v308 = vmul.f32 %v254, %v303
        %v309 = vmul.f32 %v257, %v301
        %310 = vrot.lane.b32.xlu0 %v251, 34
        %v311 = vpop.permute.xlu0 %310
        %312 = vrot.lane.b32.xlu0 %v252, 34
        %v313 = vpop.permute.xlu0 %312
        %vm314 = vcmask 277504
        %v315 = vsel %vm314, %v311, %v313
        %v319 = vmul.f32 %v253, %v311
        %v320 = vmul.f32 %v254, %v315
        %v321 = vmul.f32 %v257, %v313
        %325 = vrot.lane.b32.xlu0 %v253, 127
        %v326 = vpop.permute.xlu0 %325
        %327 = vrot.lane.b32.xlu0 %v254, 127
        %v328 = vpop.permute.xlu0 %327
        %329 = vrot.lane.b32.xlu0 %v257, 127
        %v330 = vpop.permute.xlu0 %329
        %vm331 = vcmask 1039360
        %v332 = vsel %vm331, %v326, %v328
        %v333 = vsel %vm331, %v328, %v330
        %339 = vrot.lane.b32.xlu0 %v269, 126
        %v340 = vpop.permute.xlu0 %339
        %341 = vrot.lane.b32.xlu0 %v270, 126
        %v342 = vpop.permute.xlu0 %341
        %343 = vrot.lane.b32.xlu0 %v271, 126
        %v344 = vpop.permute.xlu0 %343
        %vm345 = vcmask 1031168
        %v346 = vsel %vm345, %v340, %v342
        %v347 = vsel %vm345, %v342, %v344
        %353 = vrot.lane.b32.xlu0 %v283, 112
        %v354 = vpop.permute.xlu0 %353
        %355 = vrot.lane.b32.xlu0 %v284, 112
        %v356 = vpop.permute.xlu0 %355
        %357 = vrot.lane.b32.xlu0 %v285, 112
        %v358 = vpop.permute.xlu0 %357
        %vm359 = vcmask 916480
        %v360 = vsel %vm359, %v354, %v356
        %v361 = vsel %vm359, %v356, %v358
        %364 = vrot.lane.b32.xlu0 %v253, 111
        %v365 = vpop.permute.xlu0 %364
        %366 = vrot.lane.b32.xlu0 %v254, 111
        %v367 = vpop.permute.xlu0 %366
        %368 = vrot.lane.b32.xlu0 %v257, 111
        %v369 = vpop.permute.xlu0 %368
        %vm370 = vcmask 908288
        %v371 = vsel %vm370, %v365, %v367
        %v372 = vsel %vm370, %v367, %v369
        %378 = vrot.lane.b32.xlu0 %v295, 110
        %v379 = vpop.permute.xlu0 %378
        %380 = vrot.lane.b32.xlu0 %v296, 110
        %v381 = vpop.permute.xlu0 %380
        %382 = vrot.lane.b32.xlu0 %v297, 110
        %v383 = vpop.permute.xlu0 %382
        %vm384 = vcmask 900096
        %v385 = vsel %vm384, %v379, %v381
        %v386 = vsel %vm384, %v381, %v383
        %392 = vrot.lane.b32.xlu0 %v307, 96
        %v393 = vpop.permute.xlu0 %392
        %394 = vrot.lane.b32.xlu0 %v308, 96
        %v395 = vpop.permute.xlu0 %394
        %396 = vrot.lane.b32.xlu0 %v309, 96
        %v397 = vpop.permute.xlu0 %396
        %vm398 = vcmask 785408
        %v399 = vsel %vm398, %v393, %v395
        %v400 = vsel %vm398, %v395, %v397
        %403 = vrot.lane.b32.xlu0 %v253, 95
        %v404 = vpop.permute.xlu0 %403
        %405 = vrot.lane.b32.xlu0 %v254, 95
        %v406 = vpop.permute.xlu0 %405
        %407 = vrot.lane.b32.xlu0 %v257, 95
        %v408 = vpop.permute.xlu0 %407
        %vm409 = vcmask 777216
        %v410 = vsel %vm409, %v404, %v406
        %v411 = vsel %vm409, %v406, %v408
        %417 = vrot.lane.b32.xlu0 %v319, 94
        %v418 = vpop.permute.xlu0 %417
        %419 = vrot.lane.b32.xlu0 %v320, 94
        %v420 = vpop.permute.xlu0 %419
        %421 = vrot.lane.b32.xlu0 %v321, 94
        %v422 = vpop.permute.xlu0 %421
        %vm423 = vcmask 769024
        %v424 = vsel %vm423, %v418, %v420
        %v425 = vsel %vm423, %v420, %v422
        %v428 = vld [vmem:[%s1] sm:$0xff]
        %v429 = vld [vmem:[%s2] sm:$0xff]
        %431 = vset.pattern.permute.xlu0 0
        %432 = vperm.xlu0 %431, %v429
        %v433 = vpop.permute.xlu0 %432
        %vm435 = vcmask 588800
        %v437 = vsel %vm435, %v428, 0
        %439 = vmatprep.subr.mxu0 0.0
        %440 = vmatpush1.msra.mxu0 0.0
        %441 = vmatprep.subr.mxu0 0.0
        %442 = vmatpush1.msra.mxu0 0.0
        %443 = vmatprep.subr.mxu0 0.0
        %444 = vmatpush1.msra.mxu0 0.0
        %445 = vmatprep.subr.mxu0 0.0
        %446 = vmatpush1.msra.mxu0 0.0
        %447 = vmatprep.subr.mxu0 0.0
        %448 = vmatpush1.msra.mxu0 0.0
        %449 = vmatprep.subr.mxu0 0.0
        %450 = vmatpush1.msra.mxu0 0.0
        %451 = vmatprep.subr.mxu0 0.0
        %452 = vmatpush1.msra.mxu0 0.0
        %453 = vmatprep.subr.mxu0 %v425
        %454 = vmatpush1.msra.mxu0 %v424
        %455 = vmatprep.subr.mxu0 %v411
        %456 = vmatpush1.msra.mxu0 %v410
        %457 = vmatprep.subr.mxu0 %v400
        %458 = vmatpush1.msra.mxu0 %v399
        %459 = vmatprep.subr.mxu0 %v386
        %460 = vmatpush1.msra.mxu0 %v385
        %461 = vmatprep.subr.mxu0 %v372
        %462 = vmatpush1.msra.mxu0 %v371
        %463 = vmatprep.subr.mxu0 %v361
        %464 = vmatpush1.msra.mxu0 %v360
        %465 = vmatprep.subr.mxu0 %v347
        %466 = vmatpush1.msra.mxu0 %v346
        %467 = vmatprep.subr.mxu0 %v333
        %468 = vmatpush1.msra.mxu0 %v332
        %469 = vmatprep.subr.mxu0 %v256
        %470 = vmatpush1.msra.mxu0 %v255
        %471 = vmatprep.subr.mxu0 0.0
        %472 = vmatpush2.msra.mxu0 0.0
        %473 = vmatprep.subr.mxu0 0.0
        %474 = vmatpush2.msra.mxu0 0.0
        %475 = vmatprep.subr.mxu0 0.0
        %476 = vmatpush2.msra.mxu0 0.0
        %477 = vmatprep.subr.mxu0 0.0
        %478 = vmatpush2.msra.mxu0 0.0
        %479 = vmatprep.subr.mxu0 0.0
        %480 = vmatpush2.msra.mxu0 0.0
        %481 = vmatprep.subr.mxu0 0.0
        %482 = vmatpush2.msra.mxu0 0.0
        %483 = vmatprep.subr.mxu0 0.0
        %484 = vmatpush2.msra.mxu0 0.0
        %485 = vmatprep.subr.mxu0 0.0
        %486 = vmatpush2.msra.mxu0 0.0
        %487 = vmatprep.subr.mxu0 0.0
        %488 = vmatpush2.msra.mxu0 0.0
        %489 = vmatprep.subr.mxu0 0.0
        %490 = vmatpush2.msra.mxu0 0.0
        %491 = vmatprep.subr.mxu0 0.0
        %492 = vmatpush2.msra.mxu0 0.0
        %493 = vmatprep.subr.mxu0 0.0
        %494 = vmatpush2.msra.mxu0 0.0
        %495 = vmatprep.subr.mxu0 0.0
        %496 = vmatpush2.msra.mxu0 0.0
        %497 = vmatprep.subr.mxu0 0.0
        %498 = vmatpush2.msra.mxu0 0.0
        %499 = vmatprep.subr.mxu0 0.0
        %500 = vmatpush2.msra.mxu0 0.0
        %501 = vmatprep.subr.mxu0 0.0
        %502 = vmatpush2.msra.mxu0 0.0
        %503 = vmatprep.mubr.f32.mxu0 0.0
        %504 = vmatmul.mubr.f32.gmra.mxu0 %v437
        %v505 = vpop.f32.mrf.mxu0
        %v506 = vadd.f32 %v433, %v505
        %v507 = vpop.f32.mrf.mxu0
        %v508 = vadd.f32 %v433, %v507
        %509 = vdwg.mxu0
        %v510 = vmax.f32 %v506, 0.0
        %v511 = vmax.f32 %v508, 0.0
        %512 = vst [vmem:[%s200] sm:$0xff] %v510
        %513 = vst [vmem:[%s200 + $0x8] sm:$0xff] %v511
        %s514 = sand.u32 %s110, 1
        %s515 = scalar_lea.sflag [#allocation4], %s514
        %s516 = sand.u32 %s110, 1
        %s517 = smul.addr %s516, 16
        %s518 = scalar_lea.vmem [#allocation5], %s517
        // Predicated region
        $region37: #{tpu_custom_call.1} parent=31 // pred_check
          %p519 = pneg %p120
        $region38: #{tpu_custom_call.1} parent=31 // pred_check_branch
          %521 = sbr.rel (%p519) target = $region40
        $region39: #{tpu_custom_call.1} parent=31 // pred_region
          %s522 = smul.u32 2, %s25
          %s524 = ssub.s32 256, 256
          %525 = vsyncadd %s515, %s524
          %s526 = smul.addr %s24, 2
          %s527 = sadd.s32 %s522, %s526
          %s528 = smul.addr %s527, 128
          %s529 = scalar_lea.hbm %s3, %s528
          %s531 = sshll.u32 %s518, 4
          %s532 = int_to_ptr.vmem [resolvable:$true] %s531
          %534 = dma.vmem_to_hbm [thread:$0]  %s532, 256, %s529, %s515
        $region40: #{tpu_custom_call.1} parent=31 // pred_fallthru
          _
      $region32: #{tpu_custom_call.1} parent=5 // pred_fallthru
        _
      %p535 = scmp.le.s32.totalorder 2, %s15
      // Predicated region
      $region41: #{tpu_custom_call.1} parent=5 // pred_check
        %p536 = pneg %p535
      $region42: #{tpu_custom_call.1} parent=5 // pred_check_branch
        %538 = sbr.rel (%p536) target = $region44
      $region43: #{tpu_custom_call.1} parent=5 // pred_region
        %s539 = ssub.s32 %s15, 2
        // Predicated region
        $region45: #{tpu_custom_call.1} parent=43 // pred_check
          %p540 = pneg %p126
        $region46: #{tpu_custom_call.1} parent=43 // pred_check_branch
          %542 = sbr.rel (%p540) target = $region48
        $region47: #{tpu_custom_call.1} parent=43 // pred_region
          %s543 = sand.u32 %s111, 1
          %s544 = scalar_lea.sflag [#allocation4], %s543
          %s545 = sand.u32 %s111, 1
          %s546 = smul.addr %s545, 16
          %s547 = scalar_lea.vmem [#allocation5], %s546
          %548 = dma.done %s544, 256
        $region48: #{tpu_custom_call.1} parent=43 // pred_fallthru
          _
      $region44: #{tpu_custom_call.1} parent=5 // pred_fallthru
        _
    $region6: #{tpu_custom_call.1} parent=1 // loop_footer
      %s19 = sadd.s32 1, %s15
    $region7: #{tpu_custom_call.1} parent=1 // loop_footer_branch
      %14 = sbr.rel target = $region3
    $region8: #{tpu_custom_call.1} parent=1 // loop_exit
      _
    %549 = vsyncpa [#allocation3], 1
    %s550 = scalar_lea.sflag [#allocation3], 1
    %551 = vsyncpa %s550, 1
    %552 = vsyncpa [#allocation4], 1
    %s553 = scalar_lea.sflag [#allocation4], 1
    %554 = vsyncpa %s553, 1

</llo_original>
